<compile_context>
chip_gen: v7x
topology: tpu7x:2x2x1
jax: 0.10.0
libtpu: 0.0.40
codegen_flags: <defaults>
</compile_context>

<pallas_src>
import jax
import jax.numpy as jnp
from jax.experimental import pallas as pl
from jax.experimental.pallas import tpu as pltpu

MIB = 1024 * 1024


def _round_up(x, n):
    return (x + n - 1) // n * n


def _pad_to(a, shape):
    pads = [(0, t - s) for s, t in zip(a.shape, shape)]
    if all(p == (0, 0) for p in pads):
        return a
    return jnp.pad(a, pads)


def _vmem_capacity_bytes():
    """Physical VMEM per TensorCore; conservative 64 MiB (v7x) fallback."""
    try:
        info = pltpu.get_tpu_info()
        cap = getattr(info, "vmem_capacity_bytes", None)
        if cap:
            return int(cap)
    except Exception:
        pass
    return 64 * MIB


def _adapter_mlp_resident_kernel(x_ref, wa_ref, ba_ref, wb_ref, bb_ref, o_ref):
    # x_ref : (tm, in_pad)         token tile (input dtype)
    # wa_ref: (in_pad, hid_pad)    weight A, bf16 (grid-invariant, resident)
    # ba_ref: (1, hid_pad)         bias A, f32   (resident)
    # wb_ref: (hid_pad, out_pad)   weight B, bf16 (resident -- fetched once)
    # bb_ref: (1, out_pad)         bias B, f32   (resident)
    # o_ref : (tm, out_pad)        output tile
    x = x_ref[...].astype(jnp.bfloat16)
    h = jnp.dot(x, wa_ref[...], preferred_element_type=jnp.float32)
    h = h + ba_ref[...]                       # bias in f32
    h = h * jax.nn.sigmoid(h)                 # SiLU in f32 (EUP)
    y = jnp.dot(h.astype(jnp.bfloat16), wb_ref[...],
                preferred_element_type=jnp.float32) + bb_ref[...]
    o_ref[...] = y.astype(o_ref.dtype)


def _adapter_mlp_tiled_kernel(x_ref, wa_ref, ba_ref, wb_ref, bb_ref, o_ref, h_ref):
    # Fallback path for very large out_features (W_B column-tiled by tn).
    # h_ref: (tm, hid_pad) bf16 VMEM scratch holding SiLU(conv_A(x)); it is
    # computed once per token tile at j == 0 and reused for j > 0.
    # INVARIANT: grid axis 1 must stay "arbitrary" (sequential, starting at
    # j == 0 for every token tile).  Do NOT mark axis 1 "parallel".
    @pl.when(pl.program_id(1) == 0)
    def _():
        x = x_ref[...].astype(jnp.bfloat16)
        h = jnp.dot(x, wa_ref[...], preferred_element_type=jnp.float32)
        h = h + ba_ref[...]
        h_ref[...] = (h * jax.nn.sigmoid(h)).astype(jnp.bfloat16)

    y = jnp.dot(h_ref[...], wb_ref[...],
                preferred_element_type=jnp.float32) + bb_ref[...]
    o_ref[...] = y.astype(o_ref.dtype)


def adapter_mlp(x, wa, ba, wb, bb, *, tm=None, force_tiled=False):
    """RepAdapter MLP: y = SiLU(x @ wa + ba) @ wb + bb.

    x : (..., in_features); result is (..., out_features) in x.dtype.
    wa: (in_features, hidden_dim)  == conv_A.weight.T
    ba: (hidden_dim,)
    wb: (hidden_dim, out_features) == conv_B.weight.T
    bb: (out_features,)
    """
    in_features, hidden_dim = wa.shape
    out_features = wb.shape[1]
    assert x.shape[-1] == in_features

    lead_shape = x.shape[:-1]
    m = 1
    for d in lead_shape:
        m *= d

    x_item = jnp.dtype(x.dtype).itemsize
    out_item = x_item

    # Lane-dense zero padding of all feature dims.  Exact: padded x / weight /
    # bias entries are zero, SiLU(0) = 0, and padded rows/cols are sliced off.
    in_pad = _round_up(in_features, 128)
    hid_pad = _round_up(hidden_dim, 128)

    vmem_cap = _vmem_capacity_bytes()
    vmem_budget = int(vmem_cap * 5 // 8)          # ~40 MiB on v7x, ~80 MiB on v5e/v6e
    # Keep W_B resident unless it is genuinely large; stricter on v7x (64 MiB).
    residency_threshold = 8 * MIB if vmem_cap <= 64 * MIB else 16 * MIB

    out_pad_res = _round_up(out_features, 128)
    wb_bytes = hid_pad * out_pad_res * 2          # bf16
    resident = (not force_tiled) and (wb_bytes <= residency_threshold)

    if tm is None:
        tm = 1024 if vmem_cap >= 100 * MIB else 512

    m8 = _round_up(max(m, 1), 8)
    tm_eff = _round_up(min(tm, m8), 8)
    # Keep >= 2 token-tile steps so the "parallel" axis can be split across
    # v7x's two TensorCores (no effect on single-TC v5e/v6e).
    if m8 >= 16:
        tm_eff = min(tm_eff, _round_up(m8 // 2, 8))

    wa_p = _pad_to(wa, (in_pad, hid_pad)).astype(jnp.bfloat16)
    ba_p = _pad_to(ba.astype(jnp.float32).reshape(1, hidden_dim), (1, hid_pad))

    if resident:
        out_pad = out_pad_res

        def footprint(t):
            return (2 * t * in_pad * x_item        # x tiles (double-buffered)
                    + 2 * in_pad * hid_pad * 2     # W_A bf16
                    + 2 * hid_pad * 4              # ba f32
                    + 2 * hid_pad * out_pad * 2    # W_B bf16 (resident)
                    + 2 * out_pad * 4              # bb f32
                    + 2 * t * out_pad * out_item   # out tiles (double-buffered)
                    + t * hid_pad * 4              # f32 hidden intermediate
                    + t * out_pad * 4)             # f32 acc of 2nd matmul

        while tm_eff > 8 and footprint(tm_eff) > vmem_budget:
            tm_eff = _round_up(tm_eff // 2, 8)

        m_pad = _round_up(m8, tm_eff)
        grid = (m_pad // tm_eff,)

        x2 = _pad_to(x.reshape(m, in_features), (m_pad, in_pad))
        wb_p = _pad_to(wb, (hid_pad, out_pad)).astype(jnp.bfloat16)
        bb_p = _pad_to(bb.astype(jnp.float32).reshape(1, out_features), (1, out_pad))

        cost = pl.CostEstimate(
            flops=2 * m * (in_features * hidden_dim + hidden_dim * out_features),
            transcendentals=m * hidden_dim,
            bytes_accessed=(m * in_features * x_item
                            + m * out_features * out_item
                            + 2 * (in_pad * hid_pad + hid_pad * out_pad)
                            + 4 * (hid_pad + out_pad)),
        )
        vmem_limit = int(min(max(footprint(tm_eff) + 8 * MIB, 16 * MIB),
                             vmem_cap * 3 // 4))

        out = pl.pallas_call(
            _adapter_mlp_resident_kernel,
            out_shape=jax.ShapeDtypeStruct((m_pad, out_pad), x.dtype),
            grid_spec=pltpu.PrefetchScalarGridSpec(
                num_scalar_prefetch=0,
                grid=grid,
                in_specs=[
                    pl.BlockSpec((tm_eff, in_pad), lambda i: (i, 0)),
                    # Grid-invariant blocks: the index map never changes, so
                    # Pallas DMAs them once and they stay resident in VMEM.
                    pl.BlockSpec((in_pad, hid_pad), lambda i: (0, 0)),
                    pl.BlockSpec((1, hid_pad), lambda i: (0, 0)),
                    pl.BlockSpec((hid_pad, out_pad), lambda i: (0, 0)),
                    pl.BlockSpec((1, out_pad), lambda i: (0, 0)),
                ],
                out_specs=pl.BlockSpec((tm_eff, out_pad), lambda i: (i, 0)),
            ),
            compiler_params=pltpu.CompilerParams(
                dimension_semantics=("parallel",),
                vmem_limit_bytes=vmem_limit,
            ),
            cost_estimate=cost,
        )(x2, wa_p, ba_p, wb_p, bb_p)
    else:
        # tn-tiled fallback for very large out_features.  Pad to a multiple of
        # 256 so tn >= 256 (full MXU width on v6e/v7x, fewer grid steps).
        out_pad = _round_up(out_features, 256)
        tn = next(c for c in (1024, 512, 256) if out_pad % c == 0)

        def footprint(t):
            return (2 * t * in_pad * x_item        # x tiles
                    + 2 * in_pad * hid_pad * 2     # W_A bf16
                    + 2 * hid_pad * 4              # ba f32
                    + 2 * hid_pad * tn * 2         # W_B column tile bf16
                    + 2 * tn * 4                   # bb tile
                    + 2 * t * tn * out_item        # out tiles
                    + t * hid_pad * 2              # bf16 SiLU scratch
                    + t * hid_pad * 4              # f32 hidden before cast
                    + t * tn * 4)                  # f32 acc of 2nd matmul

        while tm_eff > 8 and footprint(tm_eff) > vmem_budget:
            tm_eff = _round_up(tm_eff // 2, 8)

        m_pad = _round_up(m8, tm_eff)
        grid = (m_pad // tm_eff, out_pad // tn)

        x2 = _pad_to(x.reshape(m, in_features), (m_pad, in_pad))
        wb_p = _pad_to(wb, (hid_pad, out_pad)).astype(jnp.bfloat16)
        bb_p = _pad_to(bb.astype(jnp.float32).reshape(1, out_features), (1, out_pad))

        cost = pl.CostEstimate(
            flops=2 * m * (in_features * hidden_dim + hidden_dim * out_features),
            transcendentals=m * hidden_dim,
            bytes_accessed=(m * in_features * x_item
                            + m * out_features * out_item
                            + 2 * in_pad * hid_pad
                            + 4 * hid_pad
                            # W_B / bb are re-streamed once per token tile.
                            + grid[0] * (2 * hid_pad * out_pad + 4 * out_pad)),
        )
        vmem_limit = int(min(max(footprint(tm_eff) + 8 * MIB, 16 * MIB),
                             vmem_cap * 3 // 4))

        out = pl.pallas_call(
            _adapter_mlp_tiled_kernel,
            out_shape=jax.ShapeDtypeStruct((m_pad, out_pad), x.dtype),
            grid_spec=pltpu.PrefetchScalarGridSpec(
                num_scalar_prefetch=0,
                grid=grid,
                in_specs=[
                    pl.BlockSpec((tm_eff, in_pad), lambda i, j: (i, 0)),
                    pl.BlockSpec((in_pad, hid_pad), lambda i, j: (0, 0)),
                    pl.BlockSpec((1, hid_pad), lambda i, j: (0, 0)),
                    pl.BlockSpec((hid_pad, tn), lambda i, j: (0, j)),
                    pl.BlockSpec((1, tn), lambda i, j: (0, j)),
                ],
                out_specs=pl.BlockSpec((tm_eff, tn), lambda i, j: (i, j)),
                scratch_shapes=[pltpu.VMEM((tm_eff, hid_pad), jnp.bfloat16)],
            ),
            compiler_params=pltpu.CompilerParams(
                # Axis 1 must remain "arbitrary": the SiLU scratch is filled
                # at j == 0 and reused for j > 0 of the same token tile.
                dimension_semantics=("parallel", "arbitrary"),
                vmem_limit_bytes=vmem_limit,
            ),
            cost_estimate=cost,
        )(x2, wa_p, ba_p, wb_p, bb_p)

    out = out[:m, :out_features]
    return out.reshape(*lead_shape, out_features)


def xavier_uniform(key, shape, dtype=jnp.float32):
    # torch.nn.init.xavier_uniform_ on a Linear weight of shape (out, in):
    # bound = sqrt(6 / (fan_in + fan_out)).  Our `shape` is (in, out)
    # (transposed), which gives the same fan sum.
    fan_in, fan_out = shape[0], shape[1]
    bound = (6.0 / (fan_in + fan_out)) ** 0.5
    return jax.random.uniform(key, shape, dtype, minval=-bound, maxval=bound)


if __name__ == "__main__":
    # Small shapes consistent with the module (scaled down from 768/128/4096).
    batch, seq = 2, 8
    in_features, hidden_dim, out_features = 32, 16, 64

    key = jax.random.PRNGKey(0)
    kx, ka, kb = jax.random.split(key, 3)

    x = jax.random.normal(kx, (batch, seq, in_features), dtype=jnp.float32)

    # Parameters (deterministic, in-script).  Stored as (in, out) = W^T.
    wa = xavier_uniform(ka, (in_features, hidden_dim))
    ba = jnp.zeros((hidden_dim,), jnp.float32)
    wb = xavier_uniform(kb, (hidden_dim, out_features))
    bb = jnp.zeros((out_features,), jnp.float32)

    # Resident-W_B fast path (default for realistic adapter sizes).
    y = jax.block_until_ready(adapter_mlp(x, wa, ba, wb, bb))
    assert y.shape == (batch, seq, out_features)
    assert y.dtype == x.dtype

    # Reference 1: bf16-operand / f32-accumulation reference (matches the
    # kernel's autocast-style matmul precision).
    def bf16(a):
        return a.astype(jnp.bfloat16).astype(jnp.float32)

    h_ref = bf16(x) @ bf16(wa) + ba
    h_ref = h_ref * jax.nn.sigmoid(h_ref)
    y_ref = bf16(h_ref) @ bf16(wb) + bb
    assert jnp.allclose(y, y_ref, atol=2e-3, rtol=2e-3), \
        float(jnp.max(jnp.abs(y - y_ref)))

    # Reference 2: full-f32 reference, loose tolerance (bf16 matmul operands).
    h32 = x @ wa + ba
    h32 = h32 * jax.nn.sigmoid(h32)
    y32 = h32 @ wb + bb
    assert jnp.allclose(y, y32, atol=1e-1, rtol=1e-1), \
        float(jnp.max(jnp.abs(y - y32)))

    # Tiled fallback path (used only for very large out_features) -- smoke
    # test that it compiles and agrees with the resident path.
    y_tiled = jax.block_until_ready(adapter_mlp(x, wa, ba, wb, bb, force_tiled=True))
    assert jnp.allclose(y_tiled, y, atol=1e-5, rtol=1e-5), \
        float(jnp.max(jnp.abs(y_tiled - y)))

    # bf16 I/O path: dtype passes straight through (no extra wrapper casts).
    xb = x.astype(jnp.bfloat16)
    yb = jax.block_until_ready(adapter_mlp(xb, wa, ba, wb, bb))
    assert yb.shape == (batch, seq, out_features)
    assert yb.dtype == jnp.bfloat16
    assert bool(jnp.all(jnp.isfinite(yb.astype(jnp.float32))))

    print("KERNEL_OK")
</pallas_src>

<mosaic_0001>
module attributes {stable_mosaic.version = 11 : i64} {
  func.func @_adapter_mlp_resident_kernel(%arg0: i32, %arg1: memref<8x128xf32, #tpu.memory_space<vmem>>, %arg2: memref<128x128xbf16, #tpu.memory_space<vmem>>, %arg3: memref<1x128xf32, #tpu.memory_space<vmem>>, %arg4: memref<128x128xbf16, #tpu.memory_space<vmem>>, %arg5: memref<1x128xf32, #tpu.memory_space<vmem>>, %arg6: memref<8x128xf32, #tpu.memory_space<vmem>>) attributes {dimension_semantics = [#tpu.dimension_semantics<parallel>], iteration_bounds = array<i64: 2>, scalar_prefetch = 0 : i64, scratch_operands = 0 : i64, tpu.core_type = #tpu.core_type<tc>, window_params = [{transform_indices = @transform_0, window_bounds = array<i64: 8, 128>}, {pipeline_mode = #tpu.pipeline_mode<synchronous>, transform_indices = @transform_1, window_bounds = array<i64: 128, 128>}, {pipeline_mode = #tpu.pipeline_mode<synchronous>, transform_indices = @transform_2, window_bounds = array<i64: 1, 128>}, {pipeline_mode = #tpu.pipeline_mode<synchronous>, transform_indices = @transform_3, window_bounds = array<i64: 128, 128>}, {pipeline_mode = #tpu.pipeline_mode<synchronous>, transform_indices = @transform_4, window_bounds = array<i64: 1, 128>}, {transform_indices = @transform_5, window_bounds = array<i64: 8, 128>}]} {
    %c0 = arith.constant 0 : index
    %c0_0 = arith.constant 0 : index
    %0 = vector.load %arg1[%c0, %c0_0] : memref<8x128xf32, #tpu.memory_space<vmem>>, vector<8x128xf32>
    %1 = arith.truncf %0 : vector<8x128xf32> to vector<8x128xbf16>
    %c0_1 = arith.constant 0 : index
    %c0_2 = arith.constant 0 : index
    %2 = vector.load %arg2[%c0_1, %c0_2] : memref<128x128xbf16, #tpu.memory_space<vmem>>, vector<128x128xbf16>
    %cst = arith.constant dense<0.000000e+00> : vector<8x128xf32>
    %3 = tpu.matmul %1, %2, %cst {dimension_numbers = #tpu.dot_dimension_numbers<[1], [0], [0], [1], [0, 0, 1, 1], [], []>} : vector<8x128xbf16>, vector<128x128xbf16>, vector<8x128xf32> -> vector<8x128xf32>
    %c0_3 = arith.constant 0 : index
    %c0_4 = arith.constant 0 : index
    %4 = vector.load %arg3[%c0_3, %c0_4] : memref<1x128xf32, #tpu.memory_space<vmem>>, vector<1x128xf32>
    %5 = vector.broadcast %4 : vector<1x128xf32> to vector<8x128xf32>
    %6 = arith.addf %3, %5 : vector<8x128xf32>
    %7 = arith.negf %6 : vector<8x128xf32>
    %8 = math.exp %7 : vector<8x128xf32>
    %cst_5 = arith.constant 1.000000e+00 : f32
    %9 = vector.broadcast %cst_5 : f32 to vector<8x128xf32>
    %10 = arith.addf %9, %8 : vector<8x128xf32>
    %11 = arith.divf %9, %10 : vector<8x128xf32>
    %12 = arith.mulf %6, %11 : vector<8x128xf32>
    %13 = arith.truncf %12 : vector<8x128xf32> to vector<8x128xbf16>
    %c0_6 = arith.constant 0 : index
    %c0_7 = arith.constant 0 : index
    %14 = vector.load %arg4[%c0_6, %c0_7] : memref<128x128xbf16, #tpu.memory_space<vmem>>, vector<128x128xbf16>
    %cst_8 = arith.constant dense<0.000000e+00> : vector<8x128xf32>
    %15 = tpu.matmul %13, %14, %cst_8 {dimension_numbers = #tpu.dot_dimension_numbers<[1], [0], [0], [1], [0, 0, 1, 1], [], []>} : vector<8x128xbf16>, vector<128x128xbf16>, vector<8x128xf32> -> vector<8x128xf32>
    %c0_9 = arith.constant 0 : index
    %c0_10 = arith.constant 0 : index
    %16 = vector.load %arg5[%c0_9, %c0_10] : memref<1x128xf32, #tpu.memory_space<vmem>>, vector<1x128xf32>
    %17 = vector.broadcast %16 : vector<1x128xf32> to vector<8x128xf32>
    %18 = arith.addf %15, %17 : vector<8x128xf32>
    %c0_11 = arith.constant 0 : index
    %c0_12 = arith.constant 0 : index
    %19 = vector.load %arg6[%c0_11, %c0_12] : memref<8x128xf32, #tpu.memory_space<vmem>>, vector<8x128xf32>
    tpu.vector_store %arg6[%c0_11, %c0_12], %18 {strides = array<i32>} : memref<8x128xf32, #tpu.memory_space<vmem>>, vector<8x128xf32>,
    return
  }
  func.func @transform_0(%arg0: i32) -> (i32, i32) {
    %c0_i32 = arith.constant 0 : i32
    %c0_i32_0 = arith.constant 0 : i32
    return %arg0, %c0_i32 : i32, i32
  }
  func.func @transform_1(%arg0: i32) -> (i32, i32) {
    %c0_i32 = arith.constant 0 : i32
    %c0_i32_0 = arith.constant 0 : i32
    %c0_i32_1 = arith.constant 0 : i32
    return %c0_i32, %c0_i32_0 : i32, i32
  }
  func.func @transform_2(%arg0: i32) -> (i32, i32) {
    %c0_i32 = arith.constant 0 : i32
    %c0_i32_0 = arith.constant 0 : i32
    %c0_i32_1 = arith.constant 0 : i32
    return %c0_i32, %c0_i32_0 : i32, i32
  }
  func.func @transform_3(%arg0: i32) -> (i32, i32) {
    %c0_i32 = arith.constant 0 : i32
    %c0_i32_0 = arith.constant 0 : i32
    %c0_i32_1 = arith.constant 0 : i32
    return %c0_i32, %c0_i32_0 : i32, i32
  }
  func.func @transform_4(%arg0: i32) -> (i32, i32) {
    %c0_i32 = arith.constant 0 : i32
    %c0_i32_0 = arith.constant 0 : i32
    %c0_i32_1 = arith.constant 0 : i32
    return %c0_i32, %c0_i32_0 : i32, i32
  }
  func.func @transform_5(%arg0: i32) -> (i32, i32) {
    %c0_i32 = arith.constant 0 : i32
    %c0_i32_0 = arith.constant 0 : i32
    return %arg0, %c0_i32 : i32, i32
  }
}

</mosaic_0001>

<llo_original>
// kernel: tpu_custom_call.1
$region0: #{tpu_custom_call.1}
  #allocation0 [shape = 'u32[]', space=smem, size = 0x4, offset = 0x4, fixed_abs, tag = 'smem constant byte address 0x4 - core index']
  #allocation1 [shape = 'u32[144,128]{1,0:T(1,128)}', space=vmem, size = 0x12000, scoped, tag = 'internal scratch']
  %s0 = inlined_call_operand.hbm [shape: f32[16,128], index: 0, kind: input, shape index: {}]
  %s1 = inlined_call_operand.hbm [shape: bf16[128,128], index: 1, kind: input, shape index: {}]
  %s2 = inlined_call_operand.vmem [shape: f32[1,128], index: 2, kind: input, shape index: {}]
  %s3 = inlined_call_operand.hbm [shape: bf16[128,128], index: 3, kind: input, shape index: {}]
  %s4 = inlined_call_operand.vmem [shape: f32[1,128], index: 4, kind: input, shape index: {}]
  %s5 = inlined_call_operand.hbm [shape: f32[16,128], index: 5, kind: output, shape index: {}]
  %s6 = sld [smem:[#allocation0]]
  $region65: #{tpu_custom_call.1} parent=0
    _
  %s8 = ssub.s32 1, %s6
  %s9 = scalar_select 0, %s8, %s6
  $region1: #{tpu_custom_call.1} parent=0
    #allocation2 [shape = 'u8[8192]{0}', space=vmem, size = 0x2000, scoped, tag = 'input window, operand 0']
    #allocation3 [shape = 's32[2]{0}', space=sflag, size = 0x8, scoped, tag = 'scoped memory for tpu_custom_call.1']
    #allocation4 [shape = 's32[2]{0}', space=sflag, size = 0x8, scoped, tag = 'scoped memory for tpu_custom_call.1']
    #allocation5 [shape = 'u8[32768]{0}', space=vmem, size = 0x8000, scoped, tag = 'input window, operand 1, single buffered']
    #allocation6 [shape = 's32[1]{0}', space=sflag, size = 0x4, scoped, tag = 'scoped memory for tpu_custom_call.1']
    #allocation7 [shape = 'u8[32768]{0}', space=vmem, size = 0x8000, scoped, tag = 'input window, operand 3, single buffered']
    #allocation8 [shape = 'u8[8192]{0}', space=vmem, size = 0x2000, scoped, tag = 'output window, operand 0']
    %10 = vsyncpa [#allocation3], 0
    %s11 = scalar_lea.sflag [#allocation3], 1
    %12 = vsyncpa %s11, 0
    %13 = vsyncpa [#allocation6], 0
    %14 = vsyncpa [#allocation4], 0
    %s15 = scalar_lea.sflag [#allocation4], 1
    %16 = vsyncpa %s15, 0
    loop: start=0, step=1, limit=4
    $region2: #{tpu_custom_call.1} parent=1 // loop_pre_header
      _
    $region3: #{tpu_custom_call.1} parent=1 // loop_header
      %s18 = sphi 0, %s22
      %p19 = scmp.ge.s32.totalorder %s18, 4
      %s28 = sphi 0, %s30
      %s31 = sphi 0, %s28
      %s32 = sphi 0, %s31
      %s48 = sphi 0, %s32
      %s52 = sphi 0, %s52
      %s54 = sphi 0, %s52
      %s55 = sphi 0, %s54
      %s69 = sphi 0, %s55
      %s73 = sphi 0, %s73
      %s75 = sphi 0, %s73
      %s76 = sphi 0, %s75
      %s90 = sphi 0, %s76
      %s94 = sphi 0, %s94
      %s96 = sphi 0, %s94
      %s97 = sphi 0, %s96
      %s111 = sphi 0, %s97
      %s115 = sphi 0, %s115
      %s117 = sphi 0, %s115
      %s118 = sphi 0, %s117
      %s132 = sphi 0, %s118
      %s138 = sphi 0, %s140
      %s141 = sphi 0, %s138
      %s142 = sphi 0, %s141
      %s158 = sphi 0, %s142
    $region4: #{tpu_custom_call.1} parent=1 // loop_header_branch
      %21 = sbr.rel (%p19) target = $region8
    $region5: #{tpu_custom_call.1} parent=1 // loop_body
      %s23 = ssub.s32 %s18, 1
      %s24 = ssub.s32 %s18, 2
      %s25 = sadd.s32 %s18, 1
      %s26 = ssub.s32 %s18, %s25
      %p27 = scmp.eq.s32.totalorder %s26, 0
      %s29 = sadd.s32 %s28, 1
      %s30 = scalar_select %p27, %s28, %s29
      %p33 = pneg %p27
      %p34 = scmp.eq.s32.totalorder %s18, 1
      %p35 = por %p33, %p34
      %p36 = scmp.ne.s32.totalorder %s28, %s31
      %p37 = scmp.eq.s32.totalorder %s18, 0
      %p38 = por %p36, %p37
      %p39 = scmp.ne.s32.totalorder %s28, %s31
      %p40 = scmp.eq.s32.totalorder %s23, 1
      %p41 = por %p39, %p40
      %p42 = scmp.ne.s32.totalorder %s31, %s32
      %p43 = scmp.eq.s32.totalorder %s23, 0
      %p44 = por %p42, %p43
      %p45 = scmp.ne.s32.totalorder %s31, %s32
      %p46 = scmp.eq.s32.totalorder %s24, 1
      %p47 = por %p45, %p46
      %p49 = scmp.ne.s32.totalorder %s32, %s48
      %p50 = scmp.eq.s32.totalorder %s24, 0
      %p51 = por %p49, %p50
      %s53 = sadd.s32 %s52, 1
      %p56 = scmp.eq.s32.totalorder %s18, 1
      %p57 = scmp.ne.s32.totalorder %s52, %s54
      %p58 = scmp.eq.s32.totalorder %s18, 0
      %p59 = por %p57, %p58
      %p60 = scmp.ne.s32.totalorder %s52, %s54
      %p61 = scmp.eq.s32.totalorder %s23, 1
      %p62 = por %p60, %p61
      %p63 = scmp.ne.s32.totalorder %s54, %s55
      %p64 = scmp.eq.s32.totalorder %s23, 0
      %p65 = por %p63, %p64
      %p66 = scmp.ne.s32.totalorder %s54, %s55
      %p67 = scmp.eq.s32.totalorder %s24, 1
      %p68 = por %p66, %p67
      %p70 = scmp.ne.s32.totalorder %s55, %s69
      %p71 = scmp.eq.s32.totalorder %s24, 0
      %p72 = por %p70, %p71
      %s74 = sadd.s32 %s73, 1
      %p77 = scmp.eq.s32.totalorder %s18, 1
      %p78 = scmp.ne.s32.totalorder %s73, %s75
      %p79 = scmp.eq.s32.totalorder %s18, 0
      %p80 = por %p78, %p79
      %p81 = scmp.ne.s32.totalorder %s73, %s75
      %p82 = scmp.eq.s32.totalorder %s23, 1
      %p83 = por %p81, %p82
      %p84 = scmp.ne.s32.totalorder %s75, %s76
      %p85 = scmp.eq.s32.totalorder %s23, 0
      %p86 = por %p84, %p85
      %p87 = scmp.ne.s32.totalorder %s75, %s76
      %p88 = scmp.eq.s32.totalorder %s24, 1
      %p89 = por %p87, %p88
      %p91 = scmp.ne.s32.totalorder %s76, %s90
      %p92 = scmp.eq.s32.totalorder %s24, 0
      %p93 = por %p91, %p92
      %s95 = sadd.s32 %s94, 1
      %p98 = scmp.eq.s32.totalorder %s18, 1
      %p99 = scmp.ne.s32.totalorder %s94, %s96
      %p100 = scmp.eq.s32.totalorder %s18, 0
      %p101 = por %p99, %p100
      %p102 = scmp.ne.s32.totalorder %s94, %s96
      %p103 = scmp.eq.s32.totalorder %s23, 1
      %p104 = por %p102, %p103
      %p105 = scmp.ne.s32.totalorder %s96, %s97
      %p106 = scmp.eq.s32.totalorder %s23, 0
      %p107 = por %p105, %p106
      %p108 = scmp.ne.s32.totalorder %s96, %s97
      %p109 = scmp.eq.s32.totalorder %s24, 1
      %p110 = por %p108, %p109
      %p112 = scmp.ne.s32.totalorder %s97, %s111
      %p113 = scmp.eq.s32.totalorder %s24, 0
      %p114 = por %p112, %p113
      %s116 = sadd.s32 %s115, 1
      %p119 = scmp.eq.s32.totalorder %s18, 1
      %p120 = scmp.ne.s32.totalorder %s115, %s117
      %p121 = scmp.eq.s32.totalorder %s18, 0
      %p122 = por %p120, %p121
      %p123 = scmp.ne.s32.totalorder %s115, %s117
      %p124 = scmp.eq.s32.totalorder %s23, 1
      %p125 = por %p123, %p124
      %p126 = scmp.ne.s32.totalorder %s117, %s118
      %p127 = scmp.eq.s32.totalorder %s23, 0
      %p128 = por %p126, %p127
      %p129 = scmp.ne.s32.totalorder %s117, %s118
      %p130 = scmp.eq.s32.totalorder %s24, 1
      %p131 = por %p129, %p130
      %p133 = scmp.ne.s32.totalorder %s118, %s132
      %p134 = scmp.eq.s32.totalorder %s24, 0
      %p135 = por %p133, %p134
      %s136 = ssub.s32 %s18, %s25
      %p137 = scmp.eq.s32.totalorder %s136, 0
      %s139 = sadd.s32 %s138, 1
      %s140 = scalar_select %p137, %s138, %s139
      %p143 = pneg %p137
      %p144 = scmp.eq.s32.totalorder %s18, 1
      %p145 = por %p143, %p144
      %p146 = scmp.ne.s32.totalorder %s138, %s141
      %p147 = scmp.eq.s32.totalorder %s18, 0
      %p148 = por %p146, %p147
      %p149 = scmp.ne.s32.totalorder %s138, %s141
      %p150 = scmp.eq.s32.totalorder %s23, 1
      %p151 = por %p149, %p150
      %p152 = scmp.ne.s32.totalorder %s141, %s142
      %p153 = scmp.eq.s32.totalorder %s23, 0
      %p154 = por %p152, %p153
      %p155 = scmp.ne.s32.totalorder %s141, %s142
      %p156 = scmp.eq.s32.totalorder %s24, 1
      %p157 = por %p155, %p156
      %p159 = scmp.ne.s32.totalorder %s142, %s158
      %p160 = scmp.eq.s32.totalorder %s24, 0
      %p161 = por %p159, %p160
      %p162 = scmp.le.s32.totalorder 1, %s18
      %p163 = scmp.lt.s32.totalorder %s18, 3
      %p164 = pnand %p162, %p163
      %p165 = pneg %p164
      // Predicated region
      $region9: #{tpu_custom_call.1} parent=5 // pred_check
        _
      $region10: #{tpu_custom_call.1} parent=5 // pred_check_branch
        %167 = sbr.rel (%p164) target = $region12
      $region11: #{tpu_custom_call.1} parent=5 // pred_region
        %s168 = ssub.s32 %s18, 1
        // Predicated region
        $region13: #{tpu_custom_call.1} parent=11 // pred_check
          %p169 = pneg %p65
        $region14: #{tpu_custom_call.1} parent=11 // pred_check_branch
          %171 = sbr.rel (%p169) target = $region16
        $region15: #{tpu_custom_call.1} parent=11 // pred_region
          %s173 = ssub.s32 1024, 1024
          %174 = vsyncadd [#allocation6], %s173
          %s175 = sshll.u32 [#allocation5], 4
          %s176 = int_to_ptr.vmem [resolvable:$true] %s175
          %181 = dma.hbm_to_vmem [thread:$0]  %s1, 1024, %s176, [#allocation6], 64, 64, 4
        $region16: #{tpu_custom_call.1} parent=11 // pred_fallthru
          _
        // Predicated region
        $region17: #{tpu_custom_call.1} parent=11 // pred_check
          %p182 = pneg %p86
        $region18: #{tpu_custom_call.1} parent=11 // pred_check_branch
          %184 = sbr.rel (%p182) target = $region20
        $region19: #{tpu_custom_call.1} parent=11 // pred_region
          _
        $region20: #{tpu_custom_call.1} parent=11 // pred_fallthru
          _
        // Predicated region
        $region21: #{tpu_custom_call.1} parent=11 // pred_check
          %p185 = pneg %p107
        $region22: #{tpu_custom_call.1} parent=11 // pred_check_branch
          %187 = sbr.rel (%p185) target = $region24
        $region23: #{tpu_custom_call.1} parent=11 // pred_region
          %s189 = ssub.s32 1024, 1024
          %190 = vsyncadd [#allocation6], %s189
          %s191 = sshll.u32 [#allocation7], 4
          %s192 = int_to_ptr.vmem [resolvable:$true] %s191
          %197 = dma.hbm_to_vmem [thread:$0]  %s3, 1024, %s192, [#allocation6], 64, 64, 4
        $region24: #{tpu_custom_call.1} parent=11 // pred_fallthru
          _
        // Predicated region
        $region25: #{tpu_custom_call.1} parent=11 // pred_check
          %p198 = pneg %p128
        $region26: #{tpu_custom_call.1} parent=11 // pred_check_branch
          %200 = sbr.rel (%p198) target = $region28
        $region27: #{tpu_custom_call.1} parent=11 // pred_region
          _
        $region28: #{tpu_custom_call.1} parent=11 // pred_fallthru
          _
      $region12: #{tpu_custom_call.1} parent=5 // pred_fallthru
        _
      %p201 = scmp.lt.s32.totalorder %s18, 2
      // Predicated region
      $region29: #{tpu_custom_call.1} parent=5 // pred_check
        %p202 = pneg %p201
      $region30: #{tpu_custom_call.1} parent=5 // pred_check_branch
        %204 = sbr.rel (%p202) target = $region32
      $region31: #{tpu_custom_call.1} parent=5 // pred_region
        // Predicated region
        $region33: #{tpu_custom_call.1} parent=31 // pred_check
          %p205 = pneg %p38
        $region34: #{tpu_custom_call.1} parent=31 // pred_check_branch
          %207 = sbr.rel (%p205) target = $region36
        $region35: #{tpu_custom_call.1} parent=31 // pred_region
          %s208 = sand.u32 %s28, 1
          %s209 = scalar_lea.sflag [#allocation3], %s208
          %s210 = sand.u32 %s28, 1
          %s211 = smul.addr %s210, 8
          %s212 = scalar_lea.vmem [#allocation2], %s211
          %s214 = ssub.s32 128, 128
          %215 = vsyncadd %s209, %s214
          %s216 = smul.addr %s18, 128
          %s217 = scalar_lea.hbm %s0, %s216
          %s219 = sshll.u32 %s212, 4
          %s220 = int_to_ptr.vmem [resolvable:$true] %s219
          %222 = dma.hbm_to_vmem [thread:$0]  %s217, 128, %s220, %s209
        $region36: #{tpu_custom_call.1} parent=31 // pred_fallthru
          _
      $region32: #{tpu_custom_call.1} parent=5 // pred_fallthru
        _
      %p223 = scmp.le.s32.totalorder 1, %s18
      %p224 = scmp.lt.s32.totalorder %s18, 3
      %p225 = pnand %p223, %p224
      %p226 = pneg %p225
      // Predicated region
      $region37: #{tpu_custom_call.1} parent=5 // pred_check
        _
      $region38: #{tpu_custom_call.1} parent=5 // pred_check_branch
        %228 = sbr.rel (%p225) target = $region40
      $region39: #{tpu_custom_call.1} parent=5 // pred_region
        %s229 = ssub.s32 %s18, 1
        %s230 = sand.u32 %s31, 1
        %s231 = scalar_lea.sflag [#allocation3], %s230
        %s232 = sand.u32 %s31, 1
        %s233 = smul.addr %s232, 8
        %s234 = scalar_lea.vmem [#allocation2], %s233
        // Predicated region
        $region41: #{tpu_custom_call.1} parent=39 // pred_check
          %p235 = pneg %p44
        $region42: #{tpu_custom_call.1} parent=39 // pred_check_branch
          %237 = sbr.rel (%p235) target = $region44
        $region43: #{tpu_custom_call.1} parent=39 // pred_region
          %238 = dma.done %s231, 128
        $region44: #{tpu_custom_call.1} parent=39 // pred_fallthru
          _
        // Predicated region
        $region45: #{tpu_custom_call.1} parent=39 // pred_check
          %p239 = pneg %p65
        $region46: #{tpu_custom_call.1} parent=39 // pred_check_branch
          %241 = sbr.rel (%p239) target = $region48
        $region47: #{tpu_custom_call.1} parent=39 // pred_region
          %242 = dma.done [#allocation6], 1024
        $region48: #{tpu_custom_call.1} parent=39 // pred_fallthru
          _
        // Predicated region
        $region49: #{tpu_custom_call.1} parent=39 // pred_check
          %p243 = pneg %p107
        $region50: #{tpu_custom_call.1} parent=39 // pred_check_branch
          %245 = sbr.rel (%p243) target = $region52
        $region51: #{tpu_custom_call.1} parent=39 // pred_region
          %246 = dma.done [#allocation6], 1024
        $region52: #{tpu_custom_call.1} parent=39 // pred_fallthru
          _
        %s247 = sand.u32 %s31, 1
        %s248 = scalar_lea.sflag [#allocation3], %s247
        %s249 = sand.u32 %s31, 1
        %s250 = smul.addr %s249, 8
        %s251 = scalar_lea.vmem [#allocation2], %s250
        %p252 = pneg %p44
        %p253 = pneg %p41
        %p254 = pneg %p65
        %p255 = pneg %p62
        %p256 = pneg %p86
        %p257 = pneg %p83
        %p258 = pneg %p107
        %p259 = pneg %p104
        %p260 = pneg %p128
        %p261 = pneg %p125
        %p262 = pneg %p154
        %p263 = pneg %p151
        %s264 = sand.u32 %s141, 1
        %s265 = scalar_lea.sflag [#allocation4], %s264
        %s266 = sand.u32 %s141, 1
        %s267 = smul.addr %s266, 8
        %s268 = scalar_lea.vmem [#allocation8], %s267
        %v270 = vld [vmem:[%s234] sm:$0xff]
        %v271 = vpack.c.bf16 %v270, %v270
        %v272 = vld [vmem:[#allocation5] sm:$0xf]
        %v273 = vld [vmem:[#allocation5 + $0x4] sm:$0xf]
        %v274 = vld [vmem:[#allocation5 + $0x8] sm:$0xf]
        %v275 = vld [vmem:[#allocation5 + $0xc] sm:$0xf]
        %v276 = vld [vmem:[#allocation5 + $0x10] sm:$0xf]
        %v277 = vld [vmem:[#allocation5 + $0x14] sm:$0xf]
        %v278 = vld [vmem:[#allocation5 + $0x18] sm:$0xf]
        %v279 = vld [vmem:[#allocation5 + $0x1c] sm:$0xf]
        %v280 = vld [vmem:[#allocation5 + $0x20] sm:$0xf]
        %v281 = vld [vmem:[#allocation5 + $0x24] sm:$0xf]
        %v282 = vld [vmem:[#allocation5 + $0x28] sm:$0xf]
        %v283 = vld [vmem:[#allocation5 + $0x2c] sm:$0xf]
        %v284 = vld [vmem:[#allocation5 + $0x30] sm:$0xf]
        %v285 = vld [vmem:[#allocation5 + $0x34] sm:$0xf]
        %v286 = vld [vmem:[#allocation5 + $0x38] sm:$0xf]
        %v287 = vld [vmem:[#allocation5 + $0x3c] sm:$0xf]
        %v288 = vld [vmem:[%s2] sm:$0x1]
        %v290 = vlaneseq
        %v291 = vshrl.u32 %v290, 7
        %v292 = vsub.s32 0, %v291
        %v293 = vrot.slane %v288, %v292
        %v311 = vunpack.c.l.b16 %v272
        %v312 = vunpack.c.l.b16 %v273
        %v313 = vunpack.c.l.b16 %v274
        %v314 = vunpack.c.l.b16 %v275
        %v315 = vunpack.c.l.b16 %v276
        %v316 = vunpack.c.l.b16 %v277
        %v317 = vunpack.c.l.b16 %v278
        %v318 = vunpack.c.l.b16 %v279
        %v319 = vunpack.c.l.b16 %v280
        %v320 = vunpack.c.l.b16 %v281
        %v321 = vunpack.c.l.b16 %v282
        %v322 = vunpack.c.l.b16 %v283
        %v323 = vunpack.c.l.b16 %v284
        %v324 = vunpack.c.l.b16 %v285
        %v325 = vunpack.c.l.b16 %v286
        %v326 = vunpack.c.l.b16 %v287
        %v327 = vpack.c.b16 %v312, %v311
        %v328 = vpack.c.b16 %v314, %v313
        %v329 = vpack.c.b16 %v316, %v315
        %v330 = vpack.c.b16 %v318, %v317
        %v331 = vpack.c.b16 %v320, %v319
        %v332 = vpack.c.b16 %v322, %v321
        %v333 = vpack.c.b16 %v324, %v323
        %v334 = vpack.c.b16 %v326, %v325
        %343 = vmatprep.subr.bf16.mxu0 0
        %344 = vmatpush1.bf16.msra.mxu0 %v327
        %345 = vmatprep.subr.bf16.mxu0 0
        %346 = vmatpush1.bf16.msra.mxu0 %v328
        %347 = vmatprep.subr.bf16.mxu0 0
        %348 = vmatpush1.bf16.msra.mxu0 %v329
        %349 = vmatprep.subr.bf16.mxu0 0
        %350 = vmatpush1.bf16.msra.mxu0 %v330
        %351 = vmatprep.subr.bf16.mxu0 0
        %352 = vmatpush1.bf16.msra.mxu0 %v331
        %353 = vmatprep.subr.bf16.mxu0 0
        %354 = vmatpush1.bf16.msra.mxu0 %v332
        %355 = vmatprep.subr.bf16.mxu0 0
        %356 = vmatpush1.bf16.msra.mxu0 %v333
        %357 = vmatprep.subr.bf16.mxu0 0
        %358 = vmatpush1.bf16.msra.mxu0 %v334
        %359 = vmatprep.subr.bf16.mxu0 0
        %360 = vmatpush1.bf16.msra.mxu0 0
        %361 = vmatprep.subr.bf16.mxu0 0
        %362 = vmatpush1.bf16.msra.mxu0 0
        %363 = vmatprep.subr.bf16.mxu0 0
        %364 = vmatpush1.bf16.msra.mxu0 0
        %365 = vmatprep.subr.bf16.mxu0 0
        %366 = vmatpush1.bf16.msra.mxu0 0
        %367 = vmatprep.subr.bf16.mxu0 0
        %368 = vmatpush1.bf16.msra.mxu0 0
        %369 = vmatprep.subr.bf16.mxu0 0
        %370 = vmatpush1.bf16.msra.mxu0 0
        %371 = vmatprep.subr.bf16.mxu0 0
        %372 = vmatpush1.bf16.msra.mxu0 0
        %373 = vmatprep.subr.bf16.mxu0 0
        %374 = vmatpush1.bf16.msra.mxu0 0
        %375 = vmatprep.mubr.bf16.mxu0 0
        %376 = vmatmul.mubr.bf16.gmra.mrb[0].mxu0 %v271
        %v377 = vpop.f32.mrb[0].mxu0
        %v378 = vadd.f32 %v293, %v377
        %v379 = vpop.f32.mrb[0].mxu0
        %v380 = vpop.f32.mrb[0].mxu0
        %v381 = vpop.f32.mrb[0].mxu0
        %382 = vdwg.mxu0
        %v383 = vxor.u32 %v378, 2147483648
        %v384 = vmul.f32 %v383, 1.442695
        %v385 = vpow.pop %v384
        %v386 = vadd.f32 %v385, 1.0
        %v387 = vrcp.pop %v386
        %v388 = vmul.f32 1.0, %v387
        %v389 = vmul.f32 %v378, %v388
        %v390 = vpack.c.bf16 %v389, %v389
        %v391 = vld [vmem:[#allocation7] sm:$0xf]
        %v392 = vld [vmem:[#allocation7 + $0x4] sm:$0xf]
        %v393 = vld [vmem:[#allocation7 + $0x8] sm:$0xf]
        %v394 = vld [vmem:[#allocation7 + $0xc] sm:$0xf]
        %v395 = vld [vmem:[#allocation7 + $0x10] sm:$0xf]
        %v396 = vld [vmem:[#allocation7 + $0x14] sm:$0xf]
        %v397 = vld [vmem:[#allocation7 + $0x18] sm:$0xf]
        %v398 = vld [vmem:[#allocation7 + $0x1c] sm:$0xf]
        %v399 = vld [vmem:[#allocation7 + $0x20] sm:$0xf]
        %v400 = vld [vmem:[#allocation7 + $0x24] sm:$0xf]
        %v401 = vld [vmem:[#allocation7 + $0x28] sm:$0xf]
        %v402 = vld [vmem:[#allocation7 + $0x2c] sm:$0xf]
        %v403 = vld [vmem:[#allocation7 + $0x30] sm:$0xf]
        %v404 = vld [vmem:[#allocation7 + $0x34] sm:$0xf]
        %v405 = vld [vmem:[#allocation7 + $0x38] sm:$0xf]
        %v406 = vld [vmem:[#allocation7 + $0x3c] sm:$0xf]
        %v407 = vld [vmem:[%s4] sm:$0x1]
        %v409 = vlaneseq
        %v410 = vshrl.u32 %v409, 7
        %v411 = vsub.s32 0, %v410
        %v412 = vrot.slane %v407, %v411
        %v430 = vunpack.c.l.b16 %v391
        %v431 = vunpack.c.l.b16 %v392
        %v432 = vunpack.c.l.b16 %v393
        %v433 = vunpack.c.l.b16 %v394
        %v434 = vunpack.c.l.b16 %v395
        %v435 = vunpack.c.l.b16 %v396
        %v436 = vunpack.c.l.b16 %v397
        %v437 = vunpack.c.l.b16 %v398
        %v438 = vunpack.c.l.b16 %v399
        %v439 = vunpack.c.l.b16 %v400
        %v440 = vunpack.c.l.b16 %v401
        %v441 = vunpack.c.l.b16 %v402
        %v442 = vunpack.c.l.b16 %v403
        %v443 = vunpack.c.l.b16 %v404
        %v444 = vunpack.c.l.b16 %v405
        %v445 = vunpack.c.l.b16 %v406
        %v446 = vpack.c.b16 %v431, %v430
        %v447 = vpack.c.b16 %v433, %v432
        %v448 = vpack.c.b16 %v435, %v434
        %v449 = vpack.c.b16 %v437, %v436
        %v450 = vpack.c.b16 %v439, %v438
        %v451 = vpack.c.b16 %v441, %v440
        %v452 = vpack.c.b16 %v443, %v442
        %v453 = vpack.c.b16 %v445, %v444
        %462 = vmatprep.subr.bf16.mxu0 0
        %463 = vmatpush1.bf16.msra.mxu0 %v446
        %464 = vmatprep.subr.bf16.mxu0 0
        %465 = vmatpush1.bf16.msra.mxu0 %v447
        %466 = vmatprep.subr.bf16.mxu0 0
        %467 = vmatpush1.bf16.msra.mxu0 %v448
        %468 = vmatprep.subr.bf16.mxu0 0
        %469 = vmatpush1.bf16.msra.mxu0 %v449
        %470 = vmatprep.subr.bf16.mxu0 0
        %471 = vmatpush1.bf16.msra.mxu0 %v450
        %472 = vmatprep.subr.bf16.mxu0 0
        %473 = vmatpush1.bf16.msra.mxu0 %v451
        %474 = vmatprep.subr.bf16.mxu0 0
        %475 = vmatpush1.bf16.msra.mxu0 %v452
        %476 = vmatprep.subr.bf16.mxu0 0
        %477 = vmatpush1.bf16.msra.mxu0 %v453
        %478 = vmatprep.subr.bf16.mxu0 0
        %479 = vmatpush1.bf16.msra.mxu0 0
        %480 = vmatprep.subr.bf16.mxu0 0
        %481 = vmatpush1.bf16.msra.mxu0 0
        %482 = vmatprep.subr.bf16.mxu0 0
        %483 = vmatpush1.bf16.msra.mxu0 0
        %484 = vmatprep.subr.bf16.mxu0 0
        %485 = vmatpush1.bf16.msra.mxu0 0
        %486 = vmatprep.subr.bf16.mxu0 0
        %487 = vmatpush1.bf16.msra.mxu0 0
        %488 = vmatprep.subr.bf16.mxu0 0
        %489 = vmatpush1.bf16.msra.mxu0 0
        %490 = vmatprep.subr.bf16.mxu0 0
        %491 = vmatpush1.bf16.msra.mxu0 0
        %492 = vmatprep.subr.bf16.mxu0 0
        %493 = vmatpush1.bf16.msra.mxu0 0
        %494 = vmatprep.mubr.bf16.mxu0 0
        %495 = vmatmul.mubr.bf16.gmra.mrb[0].mxu0 %v390
        %v496 = vpop.f32.mrb[0].mxu0
        %v497 = vadd.f32 %v412, %v496
        %v498 = vpop.f32.mrb[0].mxu0
        %v499 = vpop.f32.mrb[0].mxu0
        %v500 = vpop.f32.mrb[0].mxu0
        %501 = vdwg.mxu0
        %502 = vst [vmem:[%s268] sm:$0xff] %v497
        %s503 = sand.u32 %s141, 1
        %s504 = scalar_lea.sflag [#allocation4], %s503
        %s505 = sand.u32 %s141, 1
        %s506 = smul.addr %s505, 8
        %s507 = scalar_lea.vmem [#allocation8], %s506
        // Predicated region
        $region53: #{tpu_custom_call.1} parent=39 // pred_check
          %p508 = pneg %p151
        $region54: #{tpu_custom_call.1} parent=39 // pred_check_branch
          %510 = sbr.rel (%p508) target = $region56
        $region55: #{tpu_custom_call.1} parent=39 // pred_region
          %s512 = ssub.s32 128, 128
          %513 = vsyncadd %s504, %s512
          %s514 = smul.addr %s23, 128
          %s515 = scalar_lea.hbm %s5, %s514
          %s517 = sshll.u32 %s507, 4
          %s518 = int_to_ptr.vmem [resolvable:$true] %s517
          %520 = dma.vmem_to_hbm [thread:$0]  %s518, 128, %s515, %s504
        $region56: #{tpu_custom_call.1} parent=39 // pred_fallthru
          _
      $region40: #{tpu_custom_call.1} parent=5 // pred_fallthru
        _
      %p521 = scmp.le.s32.totalorder 2, %s18
      // Predicated region
      $region57: #{tpu_custom_call.1} parent=5 // pred_check
        %p522 = pneg %p521
      $region58: #{tpu_custom_call.1} parent=5 // pred_check_branch
        %524 = sbr.rel (%p522) target = $region60
      $region59: #{tpu_custom_call.1} parent=5 // pred_region
        %s525 = ssub.s32 %s18, 2
        // Predicated region
        $region61: #{tpu_custom_call.1} parent=59 // pred_check
          %p526 = pneg %p157
        $region62: #{tpu_custom_call.1} parent=59 // pred_check_branch
          %528 = sbr.rel (%p526) target = $region64
        $region63: #{tpu_custom_call.1} parent=59 // pred_region
          %s529 = sand.u32 %s142, 1
          %s530 = scalar_lea.sflag [#allocation4], %s529
          %s531 = sand.u32 %s142, 1
          %s532 = smul.addr %s531, 8
          %s533 = scalar_lea.vmem [#allocation8], %s532
          %534 = dma.done %s530, 128
        $region64: #{tpu_custom_call.1} parent=59 // pred_fallthru
          _
      $region60: #{tpu_custom_call.1} parent=5 // pred_fallthru
        _
    $region6: #{tpu_custom_call.1} parent=1 // loop_footer
      %s22 = sadd.s32 1, %s18
    $region7: #{tpu_custom_call.1} parent=1 // loop_footer_branch
      %17 = sbr.rel target = $region3
    $region8: #{tpu_custom_call.1} parent=1 // loop_exit
      _
    %535 = vsyncpa [#allocation3], 1
    %s536 = scalar_lea.sflag [#allocation3], 1
    %537 = vsyncpa %s536, 1
    %538 = vsyncpa [#allocation6], 1
    %539 = vsyncpa [#allocation4], 1
    %s540 = scalar_lea.sflag [#allocation4], 1
    %541 = vsyncpa %s540, 1

</llo_original>
